<compile_context>
chip_gen: v6e
topology: v6e:2x2x1
jax: 0.10.0
libtpu: 0.0.40
codegen_flags: <defaults>
</compile_context>

<pallas_src>
import jax
import jax.numpy as jnp
from jax.experimental import pallas as pl
from jax.experimental.pallas import tpu as pltpu


def proto_kernel(img_ref, wpT_ref, w2_ref, b2_ref, out_ref):
    m, h = img_ref.shape            # m = tb * S  (batch block collapsed with tokens)
    tb, c = out_ref.shape
    s = m // tb

    x = img_ref[...]                                               # [M, H]

    # proto_sim = sigmoid(img @ Wp^T)                              -> [M, P]
    proto_sim = jax.nn.sigmoid(
        jnp.dot(x, wpT_ref[...], preferred_element_type=jnp.float32))

    # One fused matmul for both heads:
    #   z[:, :C] = merged @ Wc^T + bc   (prediction logits)
    #   z[:,  C] = merged @ Wa^T        (attention logits, ba cancels in softmax)
    z = jnp.dot(proto_sim, w2_ref[...],
                preferred_element_type=jnp.float32) + b2_ref[...]  # [M, C+1]

    pred = jax.nn.sigmoid(z[:, :c])                                # [M, C]
    att_logits = z[:, c:c + 1].reshape(tb, s)                      # [TB, S]

    # softmax over the token axis S, per batch element.
    mmax = jnp.max(att_logits, axis=-1, keepdims=True)
    e = jnp.exp(att_logits - mmax)
    denom = jnp.sum(e, axis=-1, keepdims=True)                     # [TB, 1]
    inv = pl.reciprocal(denom, approx=True)                        # EUP vrcp
    inv = inv * (2.0 - denom * inv)                                # Newton step -> f32 accuracy
    att = e * inv                                                  # [TB, S]

    # (prediction * att) summed over S.  (For very large S this reduction would
    # be better expressed as einsum('bs,bsc->bc') so it rides the MXU; at small
    # S the VPU mul + reduce is already negligible.)
    out_ref[...] = jnp.sum(pred.reshape(tb, s, c) * att[..., None], axis=1)


def prototype_module_forward(img, wp, wc, bc, wa, ba, *, tb=None):
    B, S, H = img.shape
    P = wp.shape[0]
    C = wc.shape[0]

    # ---- one-time algebraic prefusion (XLA, outside the kernel) -------------
    wpT = jnp.asarray(wp.T)                              # [H, P]
    wpc = wp @ wc.T                                      # [P, C]   == (merged @ Wc^T) folded
    wpa = wp @ wa.T                                      # [P, 1]   == (merged @ Wa^T) folded
    w2 = jnp.concatenate([wpc, wpa], axis=1)             # [P, C+1] fused weight
    b2 = jnp.concatenate([bc, jnp.zeros((1,), bc.dtype)]).reshape(1, C + 1)
    del ba  # uniform shift of all S logits -> cancels in softmax over S

    # Lane-dense 2-D input slab; reshape happens once here, not in the kernel.
    img2d = img.reshape(B * S, H)

    # ---- batch block size ----------------------------------------------------
    # Budget sits inside the default scoped-VMEM limit on all generations
    # (v5e 16 MiB, v6e/v7x 32 MiB); account for double-buffered img + weights
    # plus the f32 intermediates (proto_sim, z/pred, softmax temporaries).
    weight_bytes = 4 * (H * P + P * (C + 1) + (C + 1))
    per_batch_bytes = 4 * S * (2 * H + P + 3 * (C + 1))
    budget = 12 * 1024 * 1024
    max_tb = max(1, (budget - 2 * weight_bytes) // max(per_batch_bytes, 1))

    if tb is None:
        if B <= max_tb:
            tb = B                                   # single grid step: no per-step overhead
        else:
            # Multiple of 8 keeps partial (tb*S, H) / (tb, C) blocks sublane-aligned.
            tb = max(8, (max_tb // 8) * 8)
    tb = min(tb, B) if B <= max_tb else tb

    grid_b = pl.cdiv(B, tb)
    Bpad = grid_b * tb
    if Bpad != B:
        # Pad with zero batches; their outputs are discarded below (softmax of
        # equal logits is well defined, so no NaNs leak in).
        img2d = jnp.pad(img2d, ((0, (Bpad - B) * S), (0, 0)))

    cost = pl.CostEstimate(
        flops=2 * B * S * P * (H + C + 1) + 8 * B * S * (P + C),
        transcendentals=B * S * (P + C + 1),
        bytes_accessed=4 * (B * S * H + H * P + P * (C + 1) + (C + 1) + B * C),
    )

    out = pl.pallas_call(
        proto_kernel,
        out_shape=jax.ShapeDtypeStruct((Bpad, C), jnp.float32),
        grid_spec=pltpu.PrefetchScalarGridSpec(
            num_scalar_prefetch=0,
            grid=(grid_b,),
            in_specs=[
                pl.BlockSpec((tb * S, H), lambda b: (b, 0)),   # img block (2-D, lane-dense)
                pl.BlockSpec((H, P), lambda b: (0, 0)),        # Wp^T
                pl.BlockSpec((P, C + 1), lambda b: (0, 0)),    # [Wp@Wc^T | Wp@Wa^T]
                pl.BlockSpec((1, C + 1), lambda b: (0, 0)),    # [bc, 0]
            ],
            out_specs=pl.BlockSpec((tb, C), lambda b: (b, 0)),
        ),
        compiler_params=pltpu.CompilerParams(
            dimension_semantics=("parallel",),
        ),
        cost_estimate=cost,
    )(img2d, wpT, w2, b2)
    return out[:B]


def reference_forward(img, wp, wc, bc, wa, ba):
    # Direct (unfused) transcription of the PyTorch forward, for validation.
    proto_sim = jax.nn.sigmoid(jnp.einsum("bsh,ph->bsp", img, wp))
    merged = jnp.einsum("bsp,ph->bsh", proto_sim, wp)
    pred = jax.nn.sigmoid(jnp.einsum("bsh,ch->bsc", merged, wc) + bc)
    att = jax.nn.softmax(jnp.einsum("bsh,oh->bso", merged, wa) + ba, axis=1)
    return (pred * att).sum(axis=1)


if __name__ == "__main__":
    # Small shapes consistent with the module's forward (bmm + softmax over dim=1):
    B, S = 2, 8          # batch, tokens/patches
    H = 32               # img_size (== hidden_size)
    P = 8                # num_prototype
    C = 4                # num_concept

    key = jax.random.PRNGKey(0)
    k_img, k_wp, k_wc, k_bc, k_wa, k_ba = jax.random.split(key, 6)

    img = jax.random.normal(k_img, (B, S, H), dtype=jnp.float32)
    wp = jax.random.uniform(k_wp, (P, H), jnp.float32, -0.1, 0.1)   # prototype.weight
    wc = jax.random.uniform(k_wc, (C, H), jnp.float32, -0.1, 0.1)   # proto2concept.weight
    bc = jax.random.uniform(k_bc, (C,), jnp.float32, -0.1, 0.1)     # proto2concept.bias
    wa = jax.random.uniform(k_wa, (1, H), jnp.float32, -0.1, 0.1)   # attention_layer.weight
    ba = jax.random.uniform(k_ba, (1,), jnp.float32, -0.1, 0.1)     # attention_layer.bias

    out = prototype_module_forward(img, wp, wc, bc, wa, ba)
    out = jax.block_until_ready(out)

    ref = reference_forward(img, wp, wc, bc, wa, ba)
    assert out.shape == (B, C)
    assert jnp.allclose(out, ref, atol=1e-5, rtol=1e-5), (out, ref)

    print("KERNEL_OK")
</pallas_src>

<mosaic_0001>
module attributes {stable_mosaic.version = 11 : i64} {
  func.func @proto_kernel(%arg0: i32, %arg1: memref<16x32xf32, #tpu.memory_space<vmem>>, %arg2: memref<32x8xf32, #tpu.memory_space<vmem>>, %arg3: memref<8x5xf32, #tpu.memory_space<vmem>>, %arg4: memref<1x5xf32, #tpu.memory_space<vmem>>, %arg5: memref<2x4xf32, #tpu.memory_space<vmem>>) attributes {dimension_semantics = [#tpu.dimension_semantics<parallel>], iteration_bounds = array<i64: 1>, scalar_prefetch = 0 : i64, scratch_operands = 0 : i64, tpu.core_type = #tpu.core_type<tc>, window_params = [{transform_indices = @transform_0, window_bounds = array<i64: 16, 32>}, {pipeline_mode = #tpu.pipeline_mode<synchronous>, transform_indices = @transform_1, window_bounds = array<i64: 32, 8>}, {pipeline_mode = #tpu.pipeline_mode<synchronous>, transform_indices = @transform_2, window_bounds = array<i64: 8, 5>}, {pipeline_mode = #tpu.pipeline_mode<synchronous>, transform_indices = @transform_3, window_bounds = array<i64: 1, 5>}, {transform_indices = @transform_4, window_bounds = array<i64: 2, 4>}]} {
    %c0 = arith.constant 0 : index
    %c0_0 = arith.constant 0 : index
    %0 = vector.load %arg1[%c0, %c0_0] : memref<16x32xf32, #tpu.memory_space<vmem>>, vector<16x32xf32>
    %c0_1 = arith.constant 0 : index
    %c0_2 = arith.constant 0 : index
    %1 = vector.load %arg2[%c0_1, %c0_2] : memref<32x8xf32, #tpu.memory_space<vmem>>, vector<32x8xf32>
    %cst = arith.constant dense<0.000000e+00> : vector<16x8xf32>
    %2 = tpu.matmul %0, %1, %cst {dimension_numbers = #tpu.dot_dimension_numbers<[1], [0], [0], [1], [0, 0, 1, 1], [], []>} : vector<16x32xf32>, vector<32x8xf32>, vector<16x8xf32> -> vector<16x8xf32>
    %3 = arith.negf %2 : vector<16x8xf32>
    %4 = math.exp %3 : vector<16x8xf32>
    %cst_3 = arith.constant 1.000000e+00 : f32
    %5 = vector.broadcast %cst_3 : f32 to vector<16x8xf32>
    %6 = arith.addf %5, %4 : vector<16x8xf32>
    %7 = arith.divf %5, %6 : vector<16x8xf32>
    %c0_4 = arith.constant 0 : index
    %c0_5 = arith.constant 0 : index
    %8 = vector.load %arg3[%c0_4, %c0_5] : memref<8x5xf32, #tpu.memory_space<vmem>>, vector<8x5xf32>
    %cst_6 = arith.constant dense<0.000000e+00> : vector<16x5xf32>
    %9 = tpu.matmul %7, %8, %cst_6 {dimension_numbers = #tpu.dot_dimension_numbers<[1], [0], [0], [1], [0, 0, 1, 1], [], []>} : vector<16x8xf32>, vector<8x5xf32>, vector<16x5xf32> -> vector<16x5xf32>
    %c0_7 = arith.constant 0 : index
    %c0_8 = arith.constant 0 : index
    %10 = vector.load %arg4[%c0_7, %c0_8] : memref<1x5xf32, #tpu.memory_space<vmem>>, vector<1x5xf32>
    %11 = vector.broadcast %10 : vector<1x5xf32> to vector<16x5xf32>
    %12 = arith.addf %9, %11 : vector<16x5xf32>
    %13 = vector.extract_strided_slice %12 {offsets = [0, 0], sizes = [16, 4], strides = [1, 1]} : vector<16x5xf32> to vector<16x4xf32>
    %14 = arith.negf %13 : vector<16x4xf32>
    %15 = math.exp %14 : vector<16x4xf32>
    %cst_9 = arith.constant 1.000000e+00 : f32
    %16 = vector.broadcast %cst_9 : f32 to vector<16x4xf32>
    %17 = arith.addf %16, %15 : vector<16x4xf32>
    %18 = arith.divf %16, %17 : vector<16x4xf32>
    %19 = vector.extract_strided_slice %12 {offsets = [0, 4], sizes = [16, 1], strides = [1, 1]} : vector<16x5xf32> to vector<16x1xf32>
    %20 = vector.shape_cast %19 : vector<16x1xf32> to vector<2x8xf32>
    %cst_10 = arith.constant dense<0xFF800000> : vector<2xf32>
    %21 = vector.multi_reduction <maximumf>, %20, %cst_10 [1] : vector<2x8xf32> to vector<2xf32>
    %22 = vector.shape_cast %21 : vector<2xf32> to vector<2x1xf32>
    %23 = vector.broadcast %22 : vector<2x1xf32> to vector<2x8xf32>
    %24 = arith.subf %20, %23 : vector<2x8xf32>
    %25 = math.exp %24 : vector<2x8xf32>
    %cst_11 = arith.constant dense<0.000000e+00> : vector<2xf32>
    %26 = vector.multi_reduction <add>, %25, %cst_11 [1] : vector<2x8xf32> to vector<2xf32>
    %27 = vector.shape_cast %26 : vector<2xf32> to vector<2x1xf32>
    %28 = tpu.reciprocal %27 {approx = true} : vector<2x1xf32> -> vector<2x1xf32>
    %29 = arith.mulf %27, %28 : vector<2x1xf32>
    %cst_12 = arith.constant 2.000000e+00 : f32
    %30 = vector.broadcast %cst_12 : f32 to vector<2x1xf32>
    %31 = arith.subf %30, %29 : vector<2x1xf32>
    %32 = arith.mulf %28, %31 : vector<2x1xf32>
    %33 = vector.broadcast %32 : vector<2x1xf32> to vector<2x8xf32>
    %34 = arith.mulf %25, %33 : vector<2x8xf32>
    %35 = vector.shape_cast %18 : vector<16x4xf32> to vector<2x8x4xf32>
    %36 = vector.shape_cast %34 : vector<2x8xf32> to vector<2x8x1xf32>
    %37 = vector.broadcast %36 : vector<2x8x1xf32> to vector<2x8x4xf32>
    %38 = arith.mulf %35, %37 : vector<2x8x4xf32>
    %cst_13 = arith.constant dense<0.000000e+00> : vector<2x4xf32>
    %39 = vector.multi_reduction <add>, %38, %cst_13 [1] : vector<2x8x4xf32> to vector<2x4xf32>
    %c0_14 = arith.constant 0 : index
    %c0_15 = arith.constant 0 : index
    %40 = vector.load %arg5[%c0_14, %c0_15] : memref<2x4xf32, #tpu.memory_space<vmem>>, vector<2x4xf32>
    tpu.vector_store %arg5[%c0_14, %c0_15], %39 {strides = array<i32>} : memref<2x4xf32, #tpu.memory_space<vmem>>, vector<2x4xf32>,
    return
  }
  func.func @transform_0(%arg0: i32) -> (i32, i32) {
    %c0_i32 = arith.constant 0 : i32
    %c0_i32_0 = arith.constant 0 : i32
    return %arg0, %c0_i32 : i32, i32
  }
  func.func @transform_1(%arg0: i32) -> (i32, i32) {
    %c0_i32 = arith.constant 0 : i32
    %c0_i32_0 = arith.constant 0 : i32
    %c0_i32_1 = arith.constant 0 : i32
    return %c0_i32, %c0_i32_0 : i32, i32
  }
  func.func @transform_2(%arg0: i32) -> (i32, i32) {
    %c0_i32 = arith.constant 0 : i32
    %c0_i32_0 = arith.constant 0 : i32
    %c0_i32_1 = arith.constant 0 : i32
    return %c0_i32, %c0_i32_0 : i32, i32
  }
  func.func @transform_3(%arg0: i32) -> (i32, i32) {
    %c0_i32 = arith.constant 0 : i32
    %c0_i32_0 = arith.constant 0 : i32
    %c0_i32_1 = arith.constant 0 : i32
    return %c0_i32, %c0_i32_0 : i32, i32
  }
  func.func @transform_4(%arg0: i32) -> (i32, i32) {
    %c0_i32 = arith.constant 0 : i32
    %c0_i32_0 = arith.constant 0 : i32
    return %arg0, %c0_i32 : i32, i32
  }
}

</mosaic_0001>

<llo_original>
// kernel: tpu_custom_call.1
$region0: #{tpu_custom_call.1}
  #allocation0 [shape = 'u32[]', space=smem, size = 0x4, offset = 0x4, fixed_abs, tag = 'smem constant byte address 0x4 - core index']
  #allocation1 [shape = 'u32[144,128]{1,0:T(1,128)}', space=vmem, size = 0x12000, scoped, tag = 'internal scratch']
  %s0 = inlined_call_operand.vmem [shape: f32[16,32], index: 0, kind: input, shape index: {}]
  %s1 = inlined_call_operand.vmem [shape: f32[32,8], index: 1, kind: input, shape index: {}]
  %s2 = inlined_call_operand.vmem [shape: f32[8,5], index: 2, kind: input, shape index: {}]
  %s3 = inlined_call_operand.vmem [shape: f32[1,5], index: 3, kind: input, shape index: {}]
  %s4 = inlined_call_operand.hbm [shape: f32[2,4], index: 4, kind: output, shape index: {}]
  %s5 = sld [smem:[#allocation0]]
  $region26: #{tpu_custom_call.1} parent=0
    _
  %s7 = ssub.s32 1, %s5
  %s8 = scalar_select 0, %s7, %s5
  $region1: #{tpu_custom_call.1} parent=0
    #allocation2 [shape = 'u8[1024]{0}', space=vmem, size = 0x400, scoped, tag = 'output window, operand 0, single buffered']
    #allocation3 [shape = 's32[1]{0}', space=sflag, size = 0x4, scoped, tag = 'scoped memory for tpu_custom_call.1']
    %9 = vsyncpa [#allocation3], 0
    // Predicated region
    $region2: #{tpu_custom_call.1} parent=1 // pred_check
      _
    $region3: #{tpu_custom_call.1} parent=1 // pred_check_branch
      %11 = sbr.rel (0) target = $region5
    $region4: #{tpu_custom_call.1} parent=1 // pred_region
      _
    $region5: #{tpu_custom_call.1} parent=1 // pred_fallthru
      _
    // Predicated region
    $region6: #{tpu_custom_call.1} parent=1 // pred_check
      _
    $region7: #{tpu_custom_call.1} parent=1 // pred_check_branch
      %13 = sbr.rel (0) target = $region9
    $region8: #{tpu_custom_call.1} parent=1 // pred_region
      _
    $region9: #{tpu_custom_call.1} parent=1 // pred_fallthru
      _
    // Predicated region
    $region10: #{tpu_custom_call.1} parent=1 // pred_check
      _
    $region11: #{tpu_custom_call.1} parent=1 // pred_check_branch
      %15 = sbr.rel (0) target = $region13
    $region12: #{tpu_custom_call.1} parent=1 // pred_region
      _
    $region13: #{tpu_custom_call.1} parent=1 // pred_fallthru
      _
    // Predicated region
    $region14: #{tpu_custom_call.1} parent=1 // pred_check
      _
    $region15: #{tpu_custom_call.1} parent=1 // pred_check_branch
      %17 = sbr.rel (0) target = $region17
    $region16: #{tpu_custom_call.1} parent=1 // pred_region
      _
    $region17: #{tpu_custom_call.1} parent=1 // pred_fallthru
      _
    %v18 = vld [vmem:[%s0] sm:$0xff]
    %v19 = vld [vmem:[%s0 + $0x8] sm:$0xff]
    %v20 = vld [vmem:[%s1] sm:$0xff]
    %v21 = vld [vmem:[%s1 + $0x8] sm:$0xff]
    %v22 = vld [vmem:[%s1 + $0x10] sm:$0xff]
    %v23 = vld [vmem:[%s1 + $0x18] sm:$0xff]
    %vm24 = vcmask 261120
    %v26 = vsel %vm24, %v18, 0
    %v29 = vsel %vm24, %v19, 0
    %31 = vmatprep.subr.mxu0 0.0
    %32 = vmatpush1.msra.mxu0 0.0
    %33 = vmatprep.subr.mxu0 0.0
    %34 = vmatpush1.msra.mxu0 0.0
    %35 = vmatprep.subr.mxu0 0.0
    %36 = vmatpush1.msra.mxu0 0.0
    %37 = vmatprep.subr.mxu0 0.0
    %38 = vmatpush1.msra.mxu0 0.0
    %39 = vmatprep.subr.mxu0 0.0
    %40 = vmatpush1.msra.mxu0 0.0
    %41 = vmatprep.subr.mxu0 0.0
    %42 = vmatpush1.msra.mxu0 0.0
    %43 = vmatprep.subr.mxu0 0.0
    %44 = vmatpush1.msra.mxu0 0.0
    %45 = vmatprep.subr.mxu0 0.0
    %46 = vmatpush1.msra.mxu0 0.0
    %47 = vmatprep.subr.mxu0 0.0
    %48 = vmatpush1.msra.mxu0 0.0
    %49 = vmatprep.subr.mxu0 0.0
    %50 = vmatpush1.msra.mxu0 0.0
    %51 = vmatprep.subr.mxu0 0.0
    %52 = vmatpush1.msra.mxu0 0.0
    %53 = vmatprep.subr.mxu0 0.0
    %54 = vmatpush1.msra.mxu0 0.0
    %55 = vmatprep.subr.mxu0 0.0
    %56 = vmatpush1.msra.mxu0 %v23
    %57 = vmatprep.subr.mxu0 0.0
    %58 = vmatpush1.msra.mxu0 %v22
    %59 = vmatprep.subr.mxu0 0.0
    %60 = vmatpush1.msra.mxu0 %v21
    %61 = vmatprep.subr.mxu0 0.0
    %62 = vmatpush1.msra.mxu0 %v20
    %63 = vmatprep.subr.mxu0 0.0
    %64 = vmatpush2.msra.mxu0 0.0
    %65 = vmatprep.subr.mxu0 0.0
    %66 = vmatpush2.msra.mxu0 0.0
    %67 = vmatprep.subr.mxu0 0.0
    %68 = vmatpush2.msra.mxu0 0.0
    %69 = vmatprep.subr.mxu0 0.0
    %70 = vmatpush2.msra.mxu0 0.0
    %71 = vmatprep.subr.mxu0 0.0
    %72 = vmatpush2.msra.mxu0 0.0
    %73 = vmatprep.subr.mxu0 0.0
    %74 = vmatpush2.msra.mxu0 0.0
    %75 = vmatprep.subr.mxu0 0.0
    %76 = vmatpush2.msra.mxu0 0.0
    %77 = vmatprep.subr.mxu0 0.0
    %78 = vmatpush2.msra.mxu0 0.0
    %79 = vmatprep.subr.mxu0 0.0
    %80 = vmatpush2.msra.mxu0 0.0
    %81 = vmatprep.subr.mxu0 0.0
    %82 = vmatpush2.msra.mxu0 0.0
    %83 = vmatprep.subr.mxu0 0.0
    %84 = vmatpush2.msra.mxu0 0.0
    %85 = vmatprep.subr.mxu0 0.0
    %86 = vmatpush2.msra.mxu0 0.0
    %87 = vmatprep.subr.mxu0 0.0
    %88 = vmatpush2.msra.mxu0 0.0
    %89 = vmatprep.subr.mxu0 0.0
    %90 = vmatpush2.msra.mxu0 0.0
    %91 = vmatprep.subr.mxu0 0.0
    %92 = vmatpush2.msra.mxu0 0.0
    %93 = vmatprep.subr.mxu0 0.0
    %94 = vmatpush2.msra.mxu0 0.0
    %95 = vmatprep.mubr.f32.mxu0 0.0
    %96 = vmatmul.mubr.f32.gmra.mxu0 %v26
    %v97 = vpop.f32.mrf.mxu0
    %v98 = vadd.f32 0.0, %v97
    %v99 = vpop.f32.mrf.mxu0
    %100 = vmatprep.mubr.f32.mxu0 0.0
    %101 = vmatmul.mubr.f32.gmra.mxu0 %v29
    %v102 = vpop.f32.mrf.mxu0
    %v103 = vadd.f32 0.0, %v102
    %v104 = vpop.f32.mrf.mxu0
    %105 = vdwg.mxu0
    %v106 = vxor.u32 %v98, 2147483648
    %v107 = vxor.u32 %v103, 2147483648
    %v108 = vmul.f32 %v106, 1.442695
    %v109 = vpow.pop %v108
    %v110 = vmul.f32 %v107, 1.442695
    %v111 = vpow.pop %v110
    %v112 = vadd.f32 %v109, 1.0
    %v113 = vadd.f32 %v111, 1.0
    %v114 = vrcp.pop %v112
    %v115 = vmul.f32 1.0, %v114
    %v116 = vrcp.pop %v113
    %v117 = vmul.f32 1.0, %v116
    %v118 = vld [vmem:[%s2] sm:$0xff]
    %v119 = vld [vmem:[%s3] sm:$0x1]
    %v121 = vlaneseq
    %v122 = vshrl.u32 %v121, 7
    %v123 = vsub.s32 0, %v122
    %v124 = vrot.slane %v119, %v123
    %vm126 = vcmask 64512
    %v128 = vsel %vm126, %v115, 0
    %v131 = vsel %vm126, %v117, 0
    %133 = vmatprep.subr.mxu0 0.0
    %134 = vmatpush1.msra.mxu0 0.0
    %135 = vmatprep.subr.mxu0 0.0
    %136 = vmatpush1.msra.mxu0 0.0
    %137 = vmatprep.subr.mxu0 0.0
    %138 = vmatpush1.msra.mxu0 0.0
    %139 = vmatprep.subr.mxu0 0.0
    %140 = vmatpush1.msra.mxu0 0.0
    %141 = vmatprep.subr.mxu0 0.0
    %142 = vmatpush1.msra.mxu0 0.0
    %143 = vmatprep.subr.mxu0 0.0
    %144 = vmatpush1.msra.mxu0 0.0
    %145 = vmatprep.subr.mxu0 0.0
    %146 = vmatpush1.msra.mxu0 0.0
    %147 = vmatprep.subr.mxu0 0.0
    %148 = vmatpush1.msra.mxu0 0.0
    %149 = vmatprep.subr.mxu0 0.0
    %150 = vmatpush1.msra.mxu0 0.0
    %151 = vmatprep.subr.mxu0 0.0
    %152 = vmatpush1.msra.mxu0 0.0
    %153 = vmatprep.subr.mxu0 0.0
    %154 = vmatpush1.msra.mxu0 0.0
    %155 = vmatprep.subr.mxu0 0.0
    %156 = vmatpush1.msra.mxu0 0.0
    %157 = vmatprep.subr.mxu0 0.0
    %158 = vmatpush1.msra.mxu0 0.0
    %159 = vmatprep.subr.mxu0 0.0
    %160 = vmatpush1.msra.mxu0 0.0
    %161 = vmatprep.subr.mxu0 0.0
    %162 = vmatpush1.msra.mxu0 0.0
    %163 = vmatprep.subr.mxu0 0.0
    %164 = vmatpush1.msra.mxu0 %v118
    %165 = vmatprep.subr.mxu0 0.0
    %166 = vmatpush2.msra.mxu0 0.0
    %167 = vmatprep.subr.mxu0 0.0
    %168 = vmatpush2.msra.mxu0 0.0
    %169 = vmatprep.subr.mxu0 0.0
    %170 = vmatpush2.msra.mxu0 0.0
    %171 = vmatprep.subr.mxu0 0.0
    %172 = vmatpush2.msra.mxu0 0.0
    %173 = vmatprep.subr.mxu0 0.0
    %174 = vmatpush2.msra.mxu0 0.0
    %175 = vmatprep.subr.mxu0 0.0
    %176 = vmatpush2.msra.mxu0 0.0
    %177 = vmatprep.subr.mxu0 0.0
    %178 = vmatpush2.msra.mxu0 0.0
    %179 = vmatprep.subr.mxu0 0.0
    %180 = vmatpush2.msra.mxu0 0.0
    %181 = vmatprep.subr.mxu0 0.0
    %182 = vmatpush2.msra.mxu0 0.0
    %183 = vmatprep.subr.mxu0 0.0
    %184 = vmatpush2.msra.mxu0 0.0
    %185 = vmatprep.subr.mxu0 0.0
    %186 = vmatpush2.msra.mxu0 0.0
    %187 = vmatprep.subr.mxu0 0.0
    %188 = vmatpush2.msra.mxu0 0.0
    %189 = vmatprep.subr.mxu0 0.0
    %190 = vmatpush2.msra.mxu0 0.0
    %191 = vmatprep.subr.mxu0 0.0
    %192 = vmatpush2.msra.mxu0 0.0
    %193 = vmatprep.subr.mxu0 0.0
    %194 = vmatpush2.msra.mxu0 0.0
    %195 = vmatprep.subr.mxu0 0.0
    %196 = vmatpush2.msra.mxu0 0.0
    %197 = vmatprep.mubr.f32.mxu0 0.0
    %198 = vmatmul.mubr.f32.gmra.mxu0 %v128
    %v199 = vpop.f32.mrf.mxu0
    %v200 = vadd.f32 %v124, %v199
    %v201 = vpop.f32.mrf.mxu0
    %202 = vmatprep.mubr.f32.mxu0 0.0
    %203 = vmatmul.mubr.f32.gmra.mxu0 %v131
    %v204 = vpop.f32.mrf.mxu0
    %v205 = vadd.f32 %v124, %v204
    %v206 = vpop.f32.mrf.mxu0
    %207 = vdwg.mxu0
    %v208 = vxor.u32 %v200, 2147483648
    %v209 = vxor.u32 %v205, 2147483648
    %v210 = vmul.f32 %v208, 1.442695
    %v211 = vpow.pop %v210
    %v212 = vmul.f32 %v209, 1.442695
    %v213 = vpow.pop %v212
    %v214 = vadd.f32 %v211, 1.0
    %v215 = vadd.f32 %v213, 1.0
    %v216 = vrcp.pop %v214
    %v217 = vmul.f32 1.0, %v216
    %v218 = vrcp.pop %v215
    %v219 = vmul.f32 1.0, %v218
    %222 = vset.pattern.permute.xlu0 4
    %223 = vperm.xlu0 %222, %v200
    %v224 = vpop.permute.xlu0 %223
    %225 = vset.pattern.permute.xlu0 4
    %226 = vperm.xlu0 %225, %v205
    %v227 = vpop.permute.xlu0 %226
    %v228 = vlaneseq
    %v229 = vand.u32 %v228, 127
    %v230 = vlaneseq
    %v231 = vshrl.u32 %v230, 7
    %v232 = vsub.s32 %v229, %v231
    %v233 = vrot.slane %v224, %v232
    %v234 = vlaneseq
    %v235 = vshrl.u32 %v234, 7
    %v236 = vsub.s32 %v229, %v235
    %v237 = vrot.slane %v227, %v236
    %vm238 = vcmask 1041409
    %v239 = vsel %vm238, %v237, %v233
    %vm241 = vcmask 58368
    %v242 = vsel %vm241, %v239, -inf
    %243 = vmax.xlane.f32.xlu0 %v242
    %v244 = vpop.xlane.xlu0 %243
    %v246 = vlaneseq
    %v247 = vshrl.u32 %v246, 7
    %v248 = vsub.s32 0, %v247
    %v249 = vrot.slane %v244, %v248
    %v250 = vlaneseq
    %v251 = vshrl.u32 %v250, 7
    %v252 = vsub.s32 1, %v251
    %v253 = vrot.slane %v244, %v252
    %v256 = vsub.f32 %v200, %v249
    %v257 = vsub.f32 %v205, %v253
    %v258 = vmul.f32 %v256, 1.442695
    %v259 = vpow.pop %v258
    %v260 = vmul.f32 %v257, 1.442695
    %v261 = vpow.pop %v260
    %264 = vset.pattern.permute.xlu0 4
    %265 = vperm.xlu0 %264, %v259
    %v266 = vpop.permute.xlu0 %265
    %267 = vset.pattern.permute.xlu0 4
    %268 = vperm.xlu0 %267, %v261
    %v269 = vpop.permute.xlu0 %268
    %v270 = vlaneseq
    %v271 = vshrl.u32 %v270, 7
    %v272 = vsub.s32 %v229, %v271
    %v273 = vrot.slane %v266, %v272
    %v274 = vlaneseq
    %v275 = vshrl.u32 %v274, 7
    %v276 = vsub.s32 %v229, %v275
    %v277 = vrot.slane %v269, %v276
    %v278 = vsel %vm238, %v277, %v273
    %v280 = vsel %vm241, %v278, 0.0
    %281 = vadd.xlane.f32.xlu0 %v280
    %v282 = vpop.xlane.xlu0 %281
    %v283 = vrcp.pop %v282
    %v284 = vmul.f32 %v282, %v283
    %v285 = vsub.f32 2.0, %v284
    %v286 = vmul.f32 %v283, %v285
    %v288 = vlaneseq
    %v289 = vshrl.u32 %v288, 7
    %v290 = vsub.s32 0, %v289
    %v291 = vrot.slane %v286, %v290
    %v292 = vlaneseq
    %v293 = vshrl.u32 %v292, 7
    %v294 = vsub.s32 1, %v293
    %v295 = vrot.slane %v286, %v294
    %v298 = vmul.f32 %v259, %v291
    %v299 = vmul.f32 %v261, %v295
    %301 = vset.pattern.permute.xlu0 4
    %302 = vperm.xlu0 %301, %v298
    %v303 = vpop.permute.xlu0 %302
    %306 = vset.pattern.permute.xlu0 4
    %307 = vperm.xlu0 %306, %v299
    %v308 = vpop.permute.xlu0 %307
    %v310 = vmul.f32 %v217, %v303
    %v311 = vmul.f32 %v219, %v308
    %vm312 = vcmask 31744
    %v313 = vsel %vm312, %v310, 0.0
    %v314 = vrot.slane %v313, 4
    %v315 = vadd.f32 %v313, %v314
    %v316 = vrot.slane %v315, 2
    %v317 = vadd.f32 %v315, %v316
    %v318 = vrot.slane %v317, 1
    %v319 = vadd.f32 %v317, %v318
    %v320 = vsel %vm312, %v311, 0.0
    %v321 = vrot.slane %v320, 4
    %v322 = vadd.f32 %v320, %v321
    %v323 = vrot.slane %v322, 2
    %v324 = vadd.f32 %v322, %v323
    %v325 = vrot.slane %v324, 1
    %v326 = vadd.f32 %v324, %v325
    %v329 = vsel %vm238, %v326, %v319
    %vm331 = vcmask 25600
    %332 = vst.msk [vmem:[#allocation2] sm:$0x3] %vm331, %v329
    // Predicated region
    $region18: #{tpu_custom_call.1} parent=1 // pred_check
      _
    $region19: #{tpu_custom_call.1} parent=1 // pred_check_branch
      %334 = sbr.rel (0) target = $region21
    $region20: #{tpu_custom_call.1} parent=1 // pred_region
      %s336 = ssub.s32 32, 32
      %337 = vsyncadd [#allocation3], %s336
      %s339 = sshll.u32 [#allocation2], 4
      %s340 = int_to_ptr.vmem [resolvable:$true] %s339
      %342 = dma.vmem_to_hbm [thread:$0]  %s340, 32, %s4, [#allocation3]
    $region21: #{tpu_custom_call.1} parent=1 // pred_fallthru
      _
    // Predicated region
    $region22: #{tpu_custom_call.1} parent=1 // pred_check
      _
    $region23: #{tpu_custom_call.1} parent=1 // pred_check_branch
      %344 = sbr.rel (0) target = $region25
    $region24: #{tpu_custom_call.1} parent=1 // pred_region
      %345 = dma.done [#allocation3], 32
    $region25: #{tpu_custom_call.1} parent=1 // pred_fallthru
      _
    %346 = vsyncpa [#allocation3], 1

</llo_original>
